<compile_context>
chip_gen: v7x
topology: tpu7x:2x2x1
jax: 0.10.0
libtpu: 0.0.40
codegen_flags: <defaults>
</compile_context>

<pallas_src>
import functools

import jax
import jax.numpy as jnp
from jax.experimental import pallas as pl
from jax.experimental.pallas import tpu as pltpu


def _round_up(x, m):
    return ((x + m - 1) // m) * m


def _cdiv(a, b):
    return -(-a // b)


# Conservative per-kernel working-set budget.  v7x has 64 MiB physical VMEM
# (32 MiB default scoped limit); staying <= ~24 MiB keeps double-buffering
# intact on every generation.  We raise the scoped limit to 32 MiB explicitly
# so v5e's 16 MiB default is never the binding constraint.
_VMEM_BUDGET_BYTES = 24 * 1024 * 1024
_VMEM_LIMIT_BYTES = 32 * 1024 * 1024


# ---------------------------------------------------------------------------
# Kernel A: graph diffusion (all nconv powers for every support matrix)
# ---------------------------------------------------------------------------
def _diffusion_kernel(at_ref, x_ref, z_ref, *, support_len, order):
    # at_ref: (S, V, V)        stacked A_s^T (grid-invariant, fetched once)
    # x_ref:  (V, rt)          lane tile of x laid out as (V, N*L*C)
    # z_ref:  (S*order, V, rt) z[s*order + k] = (A_s^T)^(k+1) @ x
    x = x_ref[...]
    narrow = z_ref.dtype != jnp.float32
    for s in range(support_len):
        at = at_ref[s]                                   # (V, V)
        cur = x
        for k in range(order):
            acc = jnp.dot(at, cur, preferred_element_type=jnp.float32)
            # single cast (only when compute dtype is narrower than f32)
            cur = acc.astype(z_ref.dtype) if narrow else acc
            z_ref[s * order + k] = cur


def _pick_lane_tile(requested, R, S, V, J, itemsize):
    """Lane tile for the diffusion slab (multiple of 128, or the full slab)."""
    def fits(t):
        # A^T single-buffered + double-buffered x tile and J z slabs.
        return (S * V * V + 2 * (1 + J) * V * t) * itemsize <= _VMEM_BUDGET_BYTES

    if R <= 256:
        # Not enough lanes to split across grid steps; a full-extent last dim
        # is always a legal block shape.
        return R if requested >= R else 128
    # Keep >= 2 grid steps (v7x has two TensorCores) and respect the VMEM
    # budget re-derived for v7x's 64 MiB.
    rt = min(_round_up(requested, 128), _round_up(_cdiv(R, 2), 128))
    while rt > 128 and not fits(rt):
        rt = _round_up(rt // 2, 128)
    return rt


def graph_diffusion(at_stack, x2, *, order, r_tile=2048):
    """All diffusion hops: z[s*order+k] = (A_s^T)^(k+1) @ x.

    at_stack: (S, V, V) stacked transposed supports.
    x2:       (V, R)    x laid out as (V, N*L*C)  (lanes = (n, l, c), c fastest).
    returns   (S*order, V, R) in x2.dtype (use bf16 compute dtype to halve the
              dominant z writeback traffic).
    """
    S, V, _ = at_stack.shape
    _, R = x2.shape
    J = S * order
    itemsize = jnp.dtype(x2.dtype).itemsize

    rt = _pick_lane_tile(r_tile, R, S, V, J, itemsize)
    grid = (_cdiv(R, rt),)

    # The stacked A^T never changes across the grid; once it is large enough to
    # matter (big-V deployments), stop double-buffering it.
    if S * V * V * itemsize >= (512 << 10):
        at_spec = pl.BlockSpec((S, V, V), lambda i: (0, 0, 0),
                               pipeline_mode=pl.Buffered(1))
    else:
        at_spec = pl.BlockSpec((S, V, V), lambda i: (0, 0, 0))

    return pl.pallas_call(
        functools.partial(_diffusion_kernel, support_len=S, order=order),
        out_shape=jax.ShapeDtypeStruct((J, V, R), x2.dtype),
        grid_spec=pltpu.PrefetchScalarGridSpec(
            num_scalar_prefetch=0,
            grid=grid,
            in_specs=[
                at_spec,                                       # grid-invariant A^T
                pl.BlockSpec((V, rt), lambda i: (0, i)),
            ],
            out_specs=pl.BlockSpec((J, V, rt), lambda i: (0, 0, i)),
        ),
        compiler_params=pltpu.CompilerParams(
            dimension_semantics=("parallel",),
            vmem_limit_bytes=_VMEM_LIMIT_BYTES),
        cost_estimate=pl.CostEstimate(
            flops=2 * J * V * V * R,
            transcendentals=0,
            bytes_accessed=(V * R + S * V * V + J * V * R) * itemsize),
    )(at_stack, x2)


# ---------------------------------------------------------------------------
# Kernel B: 1x1 conv over concatenated channels as a split-K GEMM
# ---------------------------------------------------------------------------
def _splitk_mlp_kernel(x_ref, z_ref, w_ref, b_ref, o_ref, *, hops):
    # x_ref: (mt, C); z_ref: (hops, mt, C); w_ref: (hops+1, C, nt); b_ref: (1, nt)
    acc = jnp.dot(x_ref[...], w_ref[0], preferred_element_type=jnp.float32)
    for j in range(hops):
        acc = acc + jnp.dot(z_ref[j], w_ref[j + 1],
                            preferred_element_type=jnp.float32)
    o_ref[...] = (acc + b_ref[...].astype(jnp.float32)).astype(o_ref.dtype)


def _pick_row_tile(requested, M):
    if M <= 256:
        return M                      # full-extent rows: always a legal block
    # >= 2 row steps when there is enough work (v7x dual TensorCore).
    return min(_round_up(requested, 8), _round_up(_cdiv(M, 2), 8))


def conv1x1_splitk(x_rows, z_rows, w_stack, b, *, out_dtype,
                   row_tile=1024, col_tile=512):
    """y[(v,n,l), o] = x_rows @ W0 + sum_j z_rows[j] @ W_{j+1} + b.

    x_rows:  (M, C)          rows = (v, n, l), free reshape of the diffusion slab
    z_rows:  (J, M, C)       free reshape of the diffusion output
    w_stack: (J+1, C, c_out) per-block weights (block 0 multiplies x itself)
    b:       (c_out,)
    returns  (M, c_out) in out_dtype.
    """
    M, C = x_rows.shape
    J = z_rows.shape[0]
    c_out = w_stack.shape[-1]

    # Lane-dense output: pad c_out up to a multiple of 128 so stores are full
    # vst, not masked vst.msk.  Only the tiny weight/bias get padded.
    no = _round_up(c_out, 128)
    ct = _round_up(col_tile, 128)
    nt = no if no <= ct else ct
    no = _round_up(no, nt)
    if no != c_out:
        w_stack = jnp.pad(w_stack, ((0, 0), (0, 0), (0, no - c_out)))
        b = jnp.pad(b, (0, no - c_out))
    b2 = b.reshape(1, no)

    mt = _pick_row_tile(row_tile, M)
    grid = (_cdiv(M, mt), no // nt)

    itemsize = jnp.dtype(x_rows.dtype).itemsize
    out = pl.pallas_call(
        functools.partial(_splitk_mlp_kernel, hops=J),
        out_shape=jax.ShapeDtypeStruct((M, no), out_dtype),
        grid_spec=pltpu.PrefetchScalarGridSpec(
            num_scalar_prefetch=0,
            grid=grid,
            in_specs=[
                pl.BlockSpec((mt, C), lambda i, j: (i, 0)),
                pl.BlockSpec((J, mt, C), lambda i, j: (0, i, 0)),
                pl.BlockSpec((J + 1, C, nt), lambda i, j: (0, 0, j)),  # grid-invariant W
                pl.BlockSpec((1, nt), lambda i, j: (0, j)),
            ],
            out_specs=pl.BlockSpec((mt, nt), lambda i, j: (i, j)),
        ),
        compiler_params=pltpu.CompilerParams(
            dimension_semantics=("parallel", "parallel"),
            vmem_limit_bytes=_VMEM_LIMIT_BYTES),
        cost_estimate=pl.CostEstimate(
            flops=2 * M * (J + 1) * C * no,
            transcendentals=0,
            bytes_accessed=((J + 1) * M * C + (J + 1) * C * no + no + M * no) * itemsize),
    )(x_rows, z_rows, w_stack, b2)
    return out[:, :c_out] if no != c_out else out


# ---------------------------------------------------------------------------
# GCN forward (wrapper: one input transpose + one output transpose; the rest
# is free reshapes -- no activation permute/concat in HBM)
# ---------------------------------------------------------------------------
def gcn_forward(x, supports, w, b, *, order=2, dropout=0.0, compute_dtype=None,
                r_tile=2048, row_tile=1024, col_tile=512):
    """x: (N, C, V, L). supports: list of (V, V). w: (c_out, (order*len(supports)+1)*C).
    b: (c_out,). Returns (N, c_out, V, L).

    compute_dtype=jnp.bfloat16 is recommended on TPU (halves HBM traffic and
    runs the MXU at full rate; f32 accumulation is kept).  Default keeps the
    input dtype for bit-comparable results.
    """
    N, C, V, L = x.shape
    S = len(supports)
    J = S * order
    c_out, c_total = w.shape
    assert c_total == (J + 1) * C, (c_total, J, C)

    cdt = jnp.dtype(compute_dtype) if compute_dtype is not None else jnp.dtype(x.dtype)
    out_dtype = x.dtype

    # ---- stage 1: graph diffusion on a (V, N*L*C) lane-dense slab ----
    x_v = jnp.transpose(x, (2, 0, 3, 1)).reshape(V, N * L * C).astype(cdt)
    at_stack = jnp.transpose(jnp.stack(supports, axis=0), (0, 2, 1)).astype(cdt)
    z = graph_diffusion(at_stack, x_v, order=order, r_tile=r_tile)   # (J, V, N*L*C)

    # ---- stage 2: split-K GEMM over the (J+1) channel blocks.
    # z already has logical layout (J, V, N, L, C) with C fastest, so the row
    # view (J, V*N*L, C) is a FREE reshape (no permute / concat of activations).
    M = V * N * L
    x_rows = x_v.reshape(M, C)
    z_rows = z.reshape(J, M, C)
    # Torch concat order is [x, A1 x, A1^2 x, A2 x, A2^2 x, ...]; split w into
    # matching (C, c_out) blocks, stacked as a grid-invariant input.
    w_stack = jnp.transpose(w.reshape(c_out, J + 1, C), (1, 2, 0)).astype(cdt)
    y2 = conv1x1_splitk(x_rows, z_rows, w_stack, b.astype(cdt),
                        out_dtype=out_dtype, row_tile=row_tile, col_tile=col_tile)

    y = jnp.transpose(y2.reshape(V, N, L, c_out), (1, 3, 0, 2))      # (N, c_out, V, L)
    # TODO(synk): F.dropout with training=True (random mask) is not implemented;
    # inference-mode dropout is the identity.
    del dropout
    return y


# ---------------------------------------------------------------------------
# Pure-JAX reference mirroring the torch forward (inference mode)
# ---------------------------------------------------------------------------
def gcn_ref(x, supports, w, b, *, order=2):
    out = [x]
    for a in supports:
        x1 = jnp.einsum('ncvl,vw->ncwl', x, a)
        out.append(x1)
        for _ in range(2, order + 1):
            x2 = jnp.einsum('ncvl,vw->ncwl', x1, a)
            out.append(x2)
            x1 = x2
    h = jnp.concatenate(out, axis=1)
    return jnp.einsum('oc,ncvl->novl', w, h) + b[None, :, None, None]


if __name__ == "__main__":
    key = jax.random.PRNGKey(0)
    N, C, V, L = 2, 4, 16, 8            # batch, channels, num_nodes, seq_len
    support_len, order, c_out = 2, 2, 8
    c_total = (order * support_len + 1) * C

    keys = jax.random.split(key, 3 + support_len)
    x = jax.random.normal(keys[0], (N, C, V, L), dtype=jnp.float32)
    supports = []
    for s in range(support_len):
        a = jax.random.uniform(keys[3 + s], (V, V), dtype=jnp.float32)
        supports.append(a / jnp.sum(a, axis=1, keepdims=True))   # row-normalized adjacency
    w = jax.random.normal(keys[1], (c_out, c_total), dtype=jnp.float32) * 0.1
    b = jax.random.normal(keys[2], (c_out,), dtype=jnp.float32) * 0.1

    ref = gcn_ref(x, supports, w, b, order=order)

    # f32 path (exact comparison against the reference)
    y = gcn_forward(x, supports, w, b, order=order, dropout=0.3)
    y = jax.block_until_ready(y)
    assert y.shape == (N, c_out, V, L), y.shape
    assert jnp.allclose(y, ref, atol=5e-3, rtol=5e-3), float(jnp.max(jnp.abs(y - ref)))

    # bf16 operands (recommended on TPU: half the HBM traffic, full-rate MXU,
    # f32 accumulation); looser tolerance because the diffusion chain is bf16.
    y_bf16 = gcn_forward(x, supports, w, b, order=order, dropout=0.3,
                         compute_dtype=jnp.bfloat16)
    y_bf16 = jax.block_until_ready(y_bf16)
    assert jnp.allclose(y_bf16, ref, atol=6e-2, rtol=6e-2), \
        float(jnp.max(jnp.abs(y_bf16 - ref)))

    print("KERNEL_OK")
</pallas_src>

<mosaic_0001>
module attributes {stable_mosaic.version = 11 : i64} {
  func.func @_diffusion_kernel(%arg0: i32, %arg1: memref<2x16x16xf32, #tpu.memory_space<vmem>>, %arg2: memref<16x64xf32, #tpu.memory_space<vmem>>, %arg3: memref<4x16x64xf32, #tpu.memory_space<vmem>>) attributes {dimension_semantics = [#tpu.dimension_semantics<parallel>], iteration_bounds = array<i64: 1>, scalar_prefetch = 0 : i64, scratch_operands = 0 : i64, tpu.core_type = #tpu.core_type<tc>, window_params = [{pipeline_mode = #tpu.pipeline_mode<synchronous>, transform_indices = @transform_0, window_bounds = array<i64: 2, 16, 16>}, {transform_indices = @transform_1, window_bounds = array<i64: 16, 64>}, {transform_indices = @transform_2, window_bounds = array<i64: 4, 16, 64>}]} {
    %c0 = arith.constant 0 : index
    %c0_0 = arith.constant 0 : index
    %0 = vector.load %arg2[%c0, %c0_0] : memref<16x64xf32, #tpu.memory_space<vmem>>, vector<16x64xf32>
    %c0_1 = arith.constant 0 : index
    %c0_2 = arith.constant 0 : index
    %c0_3 = arith.constant 0 : index
    %1 = vector.load %arg1[%c0_1, %c0_2, %c0_3] : memref<2x16x16xf32, #tpu.memory_space<vmem>>, vector<1x16x16xf32>
    %2 = vector.shape_cast %1 : vector<1x16x16xf32> to vector<16x16xf32>
    %cst = arith.constant dense<0.000000e+00> : vector<16x64xf32>
    %3 = tpu.matmul %2, %0, %cst {dimension_numbers = #tpu.dot_dimension_numbers<[1], [0], [0], [1], [0, 0, 1, 1], [], []>} : vector<16x16xf32>, vector<16x64xf32>, vector<16x64xf32> -> vector<16x64xf32>
    %c0_4 = arith.constant 0 : index
    %c0_5 = arith.constant 0 : index
    %c0_6 = arith.constant 0 : index
    %4 = vector.load %arg3[%c0_4, %c0_5, %c0_6] : memref<4x16x64xf32, #tpu.memory_space<vmem>>, vector<1x16x64xf32>
    %5 = vector.shape_cast %4 : vector<1x16x64xf32> to vector<16x64xf32>
    %6 = vector.shape_cast %3 : vector<16x64xf32> to vector<1x16x64xf32>
    tpu.vector_store %arg3[%c0_4, %c0_5, %c0_6], %6 {strides = array<i32>} : memref<4x16x64xf32, #tpu.memory_space<vmem>>, vector<1x16x64xf32>,
    %cst_7 = arith.constant dense<0.000000e+00> : vector<16x64xf32>
    %7 = tpu.matmul %2, %3, %cst_7 {dimension_numbers = #tpu.dot_dimension_numbers<[1], [0], [0], [1], [0, 0, 1, 1], [], []>} : vector<16x16xf32>, vector<16x64xf32>, vector<16x64xf32> -> vector<16x64xf32>
    %c1 = arith.constant 1 : index
    %c0_8 = arith.constant 0 : index
    %c0_9 = arith.constant 0 : index
    %8 = vector.load %arg3[%c1, %c0_8, %c0_9] : memref<4x16x64xf32, #tpu.memory_space<vmem>>, vector<1x16x64xf32>
    %9 = vector.shape_cast %8 : vector<1x16x64xf32> to vector<16x64xf32>
    %10 = vector.shape_cast %7 : vector<16x64xf32> to vector<1x16x64xf32>
    tpu.vector_store %arg3[%c1, %c0_8, %c0_9], %10 {strides = array<i32>} : memref<4x16x64xf32, #tpu.memory_space<vmem>>, vector<1x16x64xf32>,
    %c1_10 = arith.constant 1 : index
    %c0_11 = arith.constant 0 : index
    %c0_12 = arith.constant 0 : index
    %11 = vector.load %arg1[%c1_10, %c0_11, %c0_12] : memref<2x16x16xf32, #tpu.memory_space<vmem>>, vector<1x16x16xf32>
    %12 = vector.shape_cast %11 : vector<1x16x16xf32> to vector<16x16xf32>
    %cst_13 = arith.constant dense<0.000000e+00> : vector<16x64xf32>
    %13 = tpu.matmul %12, %0, %cst_13 {dimension_numbers = #tpu.dot_dimension_numbers<[1], [0], [0], [1], [0, 0, 1, 1], [], []>} : vector<16x16xf32>, vector<16x64xf32>, vector<16x64xf32> -> vector<16x64xf32>
    %c2 = arith.constant 2 : index
    %c0_14 = arith.constant 0 : index
    %c0_15 = arith.constant 0 : index
    %14 = vector.load %arg3[%c2, %c0_14, %c0_15] : memref<4x16x64xf32, #tpu.memory_space<vmem>>, vector<1x16x64xf32>
    %15 = vector.shape_cast %14 : vector<1x16x64xf32> to vector<16x64xf32>
    %16 = vector.shape_cast %13 : vector<16x64xf32> to vector<1x16x64xf32>
    tpu.vector_store %arg3[%c2, %c0_14, %c0_15], %16 {strides = array<i32>} : memref<4x16x64xf32, #tpu.memory_space<vmem>>, vector<1x16x64xf32>,
    %cst_16 = arith.constant dense<0.000000e+00> : vector<16x64xf32>
    %17 = tpu.matmul %12, %13, %cst_16 {dimension_numbers = #tpu.dot_dimension_numbers<[1], [0], [0], [1], [0, 0, 1, 1], [], []>} : vector<16x16xf32>, vector<16x64xf32>, vector<16x64xf32> -> vector<16x64xf32>
    %c3 = arith.constant 3 : index
    %c0_17 = arith.constant 0 : index
    %c0_18 = arith.constant 0 : index
    %18 = vector.load %arg3[%c3, %c0_17, %c0_18] : memref<4x16x64xf32, #tpu.memory_space<vmem>>, vector<1x16x64xf32>
    %19 = vector.shape_cast %18 : vector<1x16x64xf32> to vector<16x64xf32>
    %20 = vector.shape_cast %17 : vector<16x64xf32> to vector<1x16x64xf32>
    tpu.vector_store %arg3[%c3, %c0_17, %c0_18], %20 {strides = array<i32>} : memref<4x16x64xf32, #tpu.memory_space<vmem>>, vector<1x16x64xf32>,
    return
  }
  func.func @transform_0(%arg0: i32) -> (i32, i32, i32) {
    %c0_i32 = arith.constant 0 : i32
    %c0_i32_0 = arith.constant 0 : i32
    %c0_i32_1 = arith.constant 0 : i32
    %c0_i32_2 = arith.constant 0 : i32
    return %c0_i32, %c0_i32_0, %c0_i32_1 : i32, i32, i32
  }
  func.func @transform_1(%arg0: i32) -> (i32, i32) {
    %c0_i32 = arith.constant 0 : i32
    %c0_i32_0 = arith.constant 0 : i32
    return %c0_i32, %arg0 : i32, i32
  }
  func.func @transform_2(%arg0: i32) -> (i32, i32, i32) {
    %c0_i32 = arith.constant 0 : i32
    %c0_i32_0 = arith.constant 0 : i32
    %c0_i32_1 = arith.constant 0 : i32
    return %c0_i32, %c0_i32_0, %arg0 : i32, i32, i32
  }
}

</mosaic_0001>

<llo_original>
// kernel: tpu_custom_call.1
$region0: #{tpu_custom_call.1}
  #allocation0 [shape = 'u32[]', space=smem, size = 0x4, offset = 0x4, fixed_abs, tag = 'smem constant byte address 0x4 - core index']
  #allocation1 [shape = 'u32[144,128]{1,0:T(1,128)}', space=vmem, size = 0x12000, scoped, tag = 'internal scratch']
  %s0 = inlined_call_operand.hbm [shape: f32[2,16,16], index: 0, kind: input, shape index: {}]
  %s1 = inlined_call_operand.hbm [shape: f32[16,64], index: 1, kind: input, shape index: {}]
  %s2 = inlined_call_operand.hbm [shape: f32[4,16,64], index: 2, kind: output, shape index: {}]
  %s3 = sld [smem:[#allocation0]]
  $region26: #{tpu_custom_call.1} parent=0
    _
  %s5 = ssub.s32 1, %s3
  %s6 = scalar_select 0, %s5, %s3
  $region1: #{tpu_custom_call.1} parent=0
    #allocation2 [shape = 'u8[16384]{0}', space=vmem, size = 0x4000, scoped, tag = 'input window, operand 0, single buffered']
    #allocation3 [shape = 's32[1]{0}', space=sflag, size = 0x4, scoped, tag = 'scoped memory for tpu_custom_call.1']
    #allocation4 [shape = 's32[1]{0}', space=sflag, size = 0x4, scoped, tag = 'scoped memory for tpu_custom_call.1']
    #allocation5 [shape = 'u8[8192]{0}', space=vmem, size = 0x2000, scoped, tag = 'input window, operand 1, single buffered']
    #allocation6 [shape = 's32[1]{0}', space=sflag, size = 0x4, scoped, tag = 'scoped memory for tpu_custom_call.1']
    #allocation7 [shape = 'u8[32768]{0}', space=vmem, size = 0x8000, scoped, tag = 'output window, operand 0, single buffered']
    %7 = vsyncpa [#allocation3], 0
    %8 = vsyncpa [#allocation6], 0
    %9 = vsyncpa [#allocation4], 0
    // Predicated region
    $region2: #{tpu_custom_call.1} parent=1 // pred_check
      _
    $region3: #{tpu_custom_call.1} parent=1 // pred_check_branch
      %11 = sbr.rel (0) target = $region5
    $region4: #{tpu_custom_call.1} parent=1 // pred_region
      %s13 = ssub.s32 512, 512
      %14 = vsyncadd [#allocation3], %s13
      %s15 = sshll.u32 [#allocation2], 4
      %s16 = int_to_ptr.vmem [resolvable:$true] %s15
      %21 = dma.hbm_to_vmem [thread:$0]  %s0, 512, %s16, [#allocation3], 128, 128, 8
    $region5: #{tpu_custom_call.1} parent=1 // pred_fallthru
      _
    // Predicated region
    $region6: #{tpu_custom_call.1} parent=1 // pred_check
      _
    $region7: #{tpu_custom_call.1} parent=1 // pred_check_branch
      %23 = sbr.rel (0) target = $region9
    $region8: #{tpu_custom_call.1} parent=1 // pred_region
      %s25 = ssub.s32 256, 256
      %26 = vsyncadd [#allocation6], %s25
      %s27 = sshll.u32 [#allocation5], 4
      %s28 = int_to_ptr.vmem [resolvable:$true] %s27
      %33 = dma.hbm_to_vmem [thread:$0]  %s1, 256, %s28, [#allocation6], 128, 128, 8
    $region9: #{tpu_custom_call.1} parent=1 // pred_fallthru
      _
    // Predicated region
    $region10: #{tpu_custom_call.1} parent=1 // pred_check
      _
    $region11: #{tpu_custom_call.1} parent=1 // pred_check_branch
      %35 = sbr.rel (0) target = $region13
    $region12: #{tpu_custom_call.1} parent=1 // pred_region
      %36 = dma.done [#allocation3], 512
    $region13: #{tpu_custom_call.1} parent=1 // pred_fallthru
      _
    // Predicated region
    $region14: #{tpu_custom_call.1} parent=1 // pred_check
      _
    $region15: #{tpu_custom_call.1} parent=1 // pred_check_branch
      %38 = sbr.rel (0) target = $region17
    $region16: #{tpu_custom_call.1} parent=1 // pred_region
      %39 = dma.done [#allocation6], 256
    $region17: #{tpu_custom_call.1} parent=1 // pred_fallthru
      _
    %v40 = vld [vmem:[#allocation5] sm:$0xff]
    %v41 = vld [vmem:[#allocation5 + $0x8] sm:$0xff]
    %v42 = vld [vmem:[#allocation2] sm:$0xff]
    %v43 = vld [vmem:[#allocation2 + $0x8] sm:$0xff]
    %vm44 = vcmask 130048
    %v46 = vsel %vm44, %v42, 0
    %v49 = vsel %vm44, %v43, 0
    %51 = vmatprep.subr.mxu0 0.0
    %52 = vmatpush1.msra.mxu0 %v40
    %53 = vmatprep.subr.mxu0 0.0
    %54 = vmatpush1.msra.mxu0 %v41
    %55 = vmatprep.subr.mxu0 0.0
    %56 = vmatpush1.msra.mxu0 0.0
    %57 = vmatprep.subr.mxu0 0.0
    %58 = vmatpush1.msra.mxu0 0.0
    %59 = vmatprep.subr.mxu0 0.0
    %60 = vmatpush1.msra.mxu0 0.0
    %61 = vmatprep.subr.mxu0 0.0
    %62 = vmatpush1.msra.mxu0 0.0
    %63 = vmatprep.subr.mxu0 0.0
    %64 = vmatpush1.msra.mxu0 0.0
    %65 = vmatprep.subr.mxu0 0.0
    %66 = vmatpush1.msra.mxu0 0.0
    %67 = vmatprep.subr.mxu0 0.0
    %68 = vmatpush1.msra.mxu0 0.0
    %69 = vmatprep.subr.mxu0 0.0
    %70 = vmatpush1.msra.mxu0 0.0
    %71 = vmatprep.subr.mxu0 0.0
    %72 = vmatpush1.msra.mxu0 0.0
    %73 = vmatprep.subr.mxu0 0.0
    %74 = vmatpush1.msra.mxu0 0.0
    %75 = vmatprep.subr.mxu0 0.0
    %76 = vmatpush1.msra.mxu0 0.0
    %77 = vmatprep.subr.mxu0 0.0
    %78 = vmatpush1.msra.mxu0 0.0
    %79 = vmatprep.subr.mxu0 0.0
    %80 = vmatpush1.msra.mxu0 0.0
    %81 = vmatprep.subr.mxu0 0.0
    %82 = vmatpush1.msra.mxu0 0.0
    %83 = vmatprep.subr.mxu0 0.0
    %84 = vmatpush1.msra.mxu0 0.0
    %85 = vmatprep.subr.mxu0 0.0
    %86 = vmatpush1.msra.mxu0 0.0
    %87 = vmatprep.subr.mxu0 0.0
    %88 = vmatpush1.msra.mxu0 0.0
    %89 = vmatprep.subr.mxu0 0.0
    %90 = vmatpush1.msra.mxu0 0.0
    %91 = vmatprep.subr.mxu0 0.0
    %92 = vmatpush1.msra.mxu0 0.0
    %93 = vmatprep.subr.mxu0 0.0
    %94 = vmatpush1.msra.mxu0 0.0
    %95 = vmatprep.subr.mxu0 0.0
    %96 = vmatpush1.msra.mxu0 0.0
    %97 = vmatprep.subr.mxu0 0.0
    %98 = vmatpush1.msra.mxu0 0.0
    %99 = vmatprep.subr.mxu0 0.0
    %100 = vmatpush1.msra.mxu0 0.0
    %101 = vmatprep.subr.mxu0 0.0
    %102 = vmatpush1.msra.mxu0 0.0
    %103 = vmatprep.subr.mxu0 0.0
    %104 = vmatpush1.msra.mxu0 0.0
    %105 = vmatprep.subr.mxu0 0.0
    %106 = vmatpush1.msra.mxu0 0.0
    %107 = vmatprep.subr.mxu0 0.0
    %108 = vmatpush1.msra.mxu0 0.0
    %109 = vmatprep.subr.mxu0 0.0
    %110 = vmatpush1.msra.mxu0 0.0
    %111 = vmatprep.subr.mxu0 0.0
    %112 = vmatpush1.msra.mxu0 0.0
    %113 = vmatprep.subr.mxu0 0.0
    %114 = vmatpush1.msra.mxu0 0.0
    %115 = vmatprep.mubr.f32.mxu0 0.0
    %116 = vmatmul.mubr.f32.gmra.mrb[0].mxu0 %v46
    %v117 = vpop.f32.mrb[0].mxu0
    %v118 = vadd.f32 0.0, %v117
    %v119 = vpop.f32.mrb[0].mxu0
    %120 = vmatprep.mubr.f32.mxu0 0.0
    %121 = vmatmul.mubr.f32.gmra.mrb[0].mxu0 %v49
    %v122 = vpop.f32.mrb[0].mxu0
    %v123 = vadd.f32 0.0, %v122
    %v124 = vpop.f32.mrb[0].mxu0
    %125 = vdwg.mxu0
    %vm126 = vcmask 523264
    %127 = vst.msk [vmem:[#allocation7] sm:$0xff] %vm126, %v118
    %128 = vst.msk [vmem:[#allocation7 + $0x8] sm:$0xff] %vm126, %v123
    %129 = vmatprep.subr.mxu0 0.0
    %130 = vmatpush1.msra.mxu0 %v118
    %131 = vmatprep.subr.mxu0 0.0
    %132 = vmatpush1.msra.mxu0 %v123
    %133 = vmatprep.subr.mxu0 0.0
    %134 = vmatpush1.msra.mxu0 0.0
    %135 = vmatprep.subr.mxu0 0.0
    %136 = vmatpush1.msra.mxu0 0.0
    %137 = vmatprep.subr.mxu0 0.0
    %138 = vmatpush1.msra.mxu0 0.0
    %139 = vmatprep.subr.mxu0 0.0
    %140 = vmatpush1.msra.mxu0 0.0
    %141 = vmatprep.subr.mxu0 0.0
    %142 = vmatpush1.msra.mxu0 0.0
    %143 = vmatprep.subr.mxu0 0.0
    %144 = vmatpush1.msra.mxu0 0.0
    %145 = vmatprep.subr.mxu0 0.0
    %146 = vmatpush1.msra.mxu0 0.0
    %147 = vmatprep.subr.mxu0 0.0
    %148 = vmatpush1.msra.mxu0 0.0
    %149 = vmatprep.subr.mxu0 0.0
    %150 = vmatpush1.msra.mxu0 0.0
    %151 = vmatprep.subr.mxu0 0.0
    %152 = vmatpush1.msra.mxu0 0.0
    %153 = vmatprep.subr.mxu0 0.0
    %154 = vmatpush1.msra.mxu0 0.0
    %155 = vmatprep.subr.mxu0 0.0
    %156 = vmatpush1.msra.mxu0 0.0
    %157 = vmatprep.subr.mxu0 0.0
    %158 = vmatpush1.msra.mxu0 0.0
    %159 = vmatprep.subr.mxu0 0.0
    %160 = vmatpush1.msra.mxu0 0.0
    %161 = vmatprep.subr.mxu0 0.0
    %162 = vmatpush1.msra.mxu0 0.0
    %163 = vmatprep.subr.mxu0 0.0
    %164 = vmatpush1.msra.mxu0 0.0
    %165 = vmatprep.subr.mxu0 0.0
    %166 = vmatpush1.msra.mxu0 0.0
    %167 = vmatprep.subr.mxu0 0.0
    %168 = vmatpush1.msra.mxu0 0.0
    %169 = vmatprep.subr.mxu0 0.0
    %170 = vmatpush1.msra.mxu0 0.0
    %171 = vmatprep.subr.mxu0 0.0
    %172 = vmatpush1.msra.mxu0 0.0
    %173 = vmatprep.subr.mxu0 0.0
    %174 = vmatpush1.msra.mxu0 0.0
    %175 = vmatprep.subr.mxu0 0.0
    %176 = vmatpush1.msra.mxu0 0.0
    %177 = vmatprep.subr.mxu0 0.0
    %178 = vmatpush1.msra.mxu0 0.0
    %179 = vmatprep.subr.mxu0 0.0
    %180 = vmatpush1.msra.mxu0 0.0
    %181 = vmatprep.subr.mxu0 0.0
    %182 = vmatpush1.msra.mxu0 0.0
    %183 = vmatprep.subr.mxu0 0.0
    %184 = vmatpush1.msra.mxu0 0.0
    %185 = vmatprep.subr.mxu0 0.0
    %186 = vmatpush1.msra.mxu0 0.0
    %187 = vmatprep.subr.mxu0 0.0
    %188 = vmatpush1.msra.mxu0 0.0
    %189 = vmatprep.subr.mxu0 0.0
    %190 = vmatpush1.msra.mxu0 0.0
    %191 = vmatprep.subr.mxu0 0.0
    %192 = vmatpush1.msra.mxu0 0.0
    %193 = vmatprep.mubr.f32.mxu0 0.0
    %194 = vmatmul.mubr.f32.gmra.mrb[0].mxu0 %v46
    %v195 = vpop.f32.mrb[0].mxu0
    %v196 = vadd.f32 0.0, %v195
    %v197 = vpop.f32.mrb[0].mxu0
    %198 = vmatprep.mubr.f32.mxu0 0.0
    %199 = vmatmul.mubr.f32.gmra.mrb[0].mxu0 %v49
    %v200 = vpop.f32.mrb[0].mxu0
    %v201 = vadd.f32 0.0, %v200
    %v202 = vpop.f32.mrb[0].mxu0
    %203 = vdwg.mxu0
    %s204 = scalar_lea.vmem [#allocation7], 16
    %205 = vst.msk [vmem:[%s204] sm:$0xff] %vm126, %v196
    %206 = vst.msk [vmem:[%s204 + $0x8] sm:$0xff] %vm126, %v201
    %s207 = scalar_lea.vmem [#allocation2], 16
    %v208 = vld [vmem:[%s207] sm:$0xff]
    %v209 = vld [vmem:[%s207 + $0x8] sm:$0xff]
    %v211 = vsel %vm44, %v208, 0
    %v214 = vsel %vm44, %v209, 0
    %216 = vmatprep.subr.mxu0 0.0
    %217 = vmatpush1.msra.mxu0 %v40
    %218 = vmatprep.subr.mxu0 0.0
    %219 = vmatpush1.msra.mxu0 %v41
    %220 = vmatprep.subr.mxu0 0.0
    %221 = vmatpush1.msra.mxu0 0.0
    %222 = vmatprep.subr.mxu0 0.0
    %223 = vmatpush1.msra.mxu0 0.0
    %224 = vmatprep.subr.mxu0 0.0
    %225 = vmatpush1.msra.mxu0 0.0
    %226 = vmatprep.subr.mxu0 0.0
    %227 = vmatpush1.msra.mxu0 0.0
    %228 = vmatprep.subr.mxu0 0.0
    %229 = vmatpush1.msra.mxu0 0.0
    %230 = vmatprep.subr.mxu0 0.0
    %231 = vmatpush1.msra.mxu0 0.0
    %232 = vmatprep.subr.mxu0 0.0
    %233 = vmatpush1.msra.mxu0 0.0
    %234 = vmatprep.subr.mxu0 0.0
    %235 = vmatpush1.msra.mxu0 0.0
    %236 = vmatprep.subr.mxu0 0.0
    %237 = vmatpush1.msra.mxu0 0.0
    %238 = vmatprep.subr.mxu0 0.0
    %239 = vmatpush1.msra.mxu0 0.0
    %240 = vmatprep.subr.mxu0 0.0
    %241 = vmatpush1.msra.mxu0 0.0
    %242 = vmatprep.subr.mxu0 0.0
    %243 = vmatpush1.msra.mxu0 0.0
    %244 = vmatprep.subr.mxu0 0.0
    %245 = vmatpush1.msra.mxu0 0.0
    %246 = vmatprep.subr.mxu0 0.0
    %247 = vmatpush1.msra.mxu0 0.0
    %248 = vmatprep.subr.mxu0 0.0
    %249 = vmatpush1.msra.mxu0 0.0
    %250 = vmatprep.subr.mxu0 0.0
    %251 = vmatpush1.msra.mxu0 0.0
    %252 = vmatprep.subr.mxu0 0.0
    %253 = vmatpush1.msra.mxu0 0.0
    %254 = vmatprep.subr.mxu0 0.0
    %255 = vmatpush1.msra.mxu0 0.0
    %256 = vmatprep.subr.mxu0 0.0
    %257 = vmatpush1.msra.mxu0 0.0
    %258 = vmatprep.subr.mxu0 0.0
    %259 = vmatpush1.msra.mxu0 0.0
    %260 = vmatprep.subr.mxu0 0.0
    %261 = vmatpush1.msra.mxu0 0.0
    %262 = vmatprep.subr.mxu0 0.0
    %263 = vmatpush1.msra.mxu0 0.0
    %264 = vmatprep.subr.mxu0 0.0
    %265 = vmatpush1.msra.mxu0 0.0
    %266 = vmatprep.subr.mxu0 0.0
    %267 = vmatpush1.msra.mxu0 0.0
    %268 = vmatprep.subr.mxu0 0.0
    %269 = vmatpush1.msra.mxu0 0.0
    %270 = vmatprep.subr.mxu0 0.0
    %271 = vmatpush1.msra.mxu0 0.0
    %272 = vmatprep.subr.mxu0 0.0
    %273 = vmatpush1.msra.mxu0 0.0
    %274 = vmatprep.subr.mxu0 0.0
    %275 = vmatpush1.msra.mxu0 0.0
    %276 = vmatprep.subr.mxu0 0.0
    %277 = vmatpush1.msra.mxu0 0.0
    %278 = vmatprep.subr.mxu0 0.0
    %279 = vmatpush1.msra.mxu0 0.0
    %280 = vmatprep.mubr.f32.mxu0 0.0
    %281 = vmatmul.mubr.f32.gmra.mrb[0].mxu0 %v211
    %v282 = vpop.f32.mrb[0].mxu0
    %v283 = vadd.f32 0.0, %v282
    %v284 = vpop.f32.mrb[0].mxu0
    %285 = vmatprep.mubr.f32.mxu0 0.0
    %286 = vmatmul.mubr.f32.gmra.mrb[0].mxu0 %v214
    %v287 = vpop.f32.mrb[0].mxu0
    %v288 = vadd.f32 0.0, %v287
    %v289 = vpop.f32.mrb[0].mxu0
    %290 = vdwg.mxu0
    %s291 = scalar_lea.vmem [#allocation7], 32
    %292 = vst.msk [vmem:[%s291] sm:$0xff] %vm126, %v283
    %293 = vst.msk [vmem:[%s291 + $0x8] sm:$0xff] %vm126, %v288
    %294 = vmatprep.subr.mxu0 0.0
    %295 = vmatpush1.msra.mxu0 %v283
    %296 = vmatprep.subr.mxu0 0.0
    %297 = vmatpush1.msra.mxu0 %v288
    %298 = vmatprep.subr.mxu0 0.0
    %299 = vmatpush1.msra.mxu0 0.0
    %300 = vmatprep.subr.mxu0 0.0
    %301 = vmatpush1.msra.mxu0 0.0
    %302 = vmatprep.subr.mxu0 0.0
    %303 = vmatpush1.msra.mxu0 0.0
    %304 = vmatprep.subr.mxu0 0.0
    %305 = vmatpush1.msra.mxu0 0.0
    %306 = vmatprep.subr.mxu0 0.0
    %307 = vmatpush1.msra.mxu0 0.0
    %308 = vmatprep.subr.mxu0 0.0
    %309 = vmatpush1.msra.mxu0 0.0
    %310 = vmatprep.subr.mxu0 0.0
    %311 = vmatpush1.msra.mxu0 0.0
    %312 = vmatprep.subr.mxu0 0.0
    %313 = vmatpush1.msra.mxu0 0.0
    %314 = vmatprep.subr.mxu0 0.0
    %315 = vmatpush1.msra.mxu0 0.0
    %316 = vmatprep.subr.mxu0 0.0
    %317 = vmatpush1.msra.mxu0 0.0
    %318 = vmatprep.subr.mxu0 0.0
    %319 = vmatpush1.msra.mxu0 0.0
    %320 = vmatprep.subr.mxu0 0.0
    %321 = vmatpush1.msra.mxu0 0.0
    %322 = vmatprep.subr.mxu0 0.0
    %323 = vmatpush1.msra.mxu0 0.0
    %324 = vmatprep.subr.mxu0 0.0
    %325 = vmatpush1.msra.mxu0 0.0
    %326 = vmatprep.subr.mxu0 0.0
    %327 = vmatpush1.msra.mxu0 0.0
    %328 = vmatprep.subr.mxu0 0.0
    %329 = vmatpush1.msra.mxu0 0.0
    %330 = vmatprep.subr.mxu0 0.0
    %331 = vmatpush1.msra.mxu0 0.0
    %332 = vmatprep.subr.mxu0 0.0
    %333 = vmatpush1.msra.mxu0 0.0
    %334 = vmatprep.subr.mxu0 0.0
    %335 = vmatpush1.msra.mxu0 0.0
    %336 = vmatprep.subr.mxu0 0.0
    %337 = vmatpush1.msra.mxu0 0.0
    %338 = vmatprep.subr.mxu0 0.0
    %339 = vmatpush1.msra.mxu0 0.0
    %340 = vmatprep.subr.mxu0 0.0
    %341 = vmatpush1.msra.mxu0 0.0
    %342 = vmatprep.subr.mxu0 0.0
    %343 = vmatpush1.msra.mxu0 0.0
    %344 = vmatprep.subr.mxu0 0.0
    %345 = vmatpush1.msra.mxu0 0.0
    %346 = vmatprep.subr.mxu0 0.0
    %347 = vmatpush1.msra.mxu0 0.0
    %348 = vmatprep.subr.mxu0 0.0
    %349 = vmatpush1.msra.mxu0 0.0
    %350 = vmatprep.subr.mxu0 0.0
    %351 = vmatpush1.msra.mxu0 0.0
    %352 = vmatprep.subr.mxu0 0.0
    %353 = vmatpush1.msra.mxu0 0.0
    %354 = vmatprep.subr.mxu0 0.0
    %355 = vmatpush1.msra.mxu0 0.0
    %356 = vmatprep.subr.mxu0 0.0
    %357 = vmatpush1.msra.mxu0 0.0
    %358 = vmatprep.mubr.f32.mxu0 0.0
    %359 = vmatmul.mubr.f32.gmra.mrb[0].mxu0 %v211
    %v360 = vpop.f32.mrb[0].mxu0
    %v361 = vadd.f32 0.0, %v360
    %v362 = vpop.f32.mrb[0].mxu0
    %363 = vmatprep.mubr.f32.mxu0 0.0
    %364 = vmatmul.mubr.f32.gmra.mrb[0].mxu0 %v214
    %v365 = vpop.f32.mrb[0].mxu0
    %v366 = vadd.f32 0.0, %v365
    %v367 = vpop.f32.mrb[0].mxu0
    %368 = vdwg.mxu0
    %s369 = scalar_lea.vmem [#allocation7], 48
    %370 = vst.msk [vmem:[%s369] sm:$0xff] %vm126, %v361
    %371 = vst.msk [vmem:[%s369 + $0x8] sm:$0xff] %vm126, %v366
    // Predicated region
    $region18: #{tpu_custom_call.1} parent=1 // pred_check
      _
    $region19: #{tpu_custom_call.1} parent=1 // pred_check_branch
      %373 = sbr.rel (0) target = $region21
    $region20: #{tpu_custom_call.1} parent=1 // pred_region
      %s375 = ssub.s32 1024, 1024
      %376 = vsyncadd [#allocation4], %s375
      %s377 = sshll.u32 [#allocation7], 4
      %s378 = int_to_ptr.vmem [resolvable:$true] %s377
      %383 = dma.vmem_to_hbm [thread:$0]  %s378, 1024, %s2, [#allocation4], 128, 128, 8
    $region21: #{tpu_custom_call.1} parent=1 // pred_fallthru
      _
    // Predicated region
    $region22: #{tpu_custom_call.1} parent=1 // pred_check
      _
    $region23: #{tpu_custom_call.1} parent=1 // pred_check_branch
      %385 = sbr.rel (0) target = $region25
    $region24: #{tpu_custom_call.1} parent=1 // pred_region
      %386 = dma.done [#allocation4], 1024
    $region25: #{tpu_custom_call.1} parent=1 // pred_fallthru
      _
    %387 = vsyncpa [#allocation3], 1
    %388 = vsyncpa [#allocation6], 1
    %389 = vsyncpa [#allocation4], 1

</llo_original>
